<compile_context>
chip_gen: v7x
topology: tpu7x:2x2x1
jax: 0.10.0
libtpu: 0.0.40
codegen_flags: <defaults>
</compile_context>

<pallas_src>
import jax
import jax.numpy as jnp
from jax.experimental import pallas as pl
from jax.experimental.pallas import tpu as pltpu

_LANE = 128


# ---------------------------------------------------------------------------
# Helpers: generation-aware VMEM budget + tile chooser
# ---------------------------------------------------------------------------
def _round_up(a, b):
    return -(-a // b) * b


def _vmem_capacity_bytes():
    try:
        info = pltpu.get_tpu_info()
        cap = getattr(info, "vmem_capacity_bytes", None)
        if cap:
            return int(cap)
    except Exception:
        pass
    return 64 * 1024 * 1024  # conservative (v7x-sized) fallback


def _choose_tile_s(S, bytes_per_lane, budget_bytes, max_tile):
    """Largest 128-multiple tile <= max_tile that fits the byte budget.

    Snaps to a divisor of the 128-padded extent when that costs < 2x (avoids a
    ragged/padded last tile); otherwise allows non-divisor tiles so awkward S
    does not collapse the tile to 128.
    """
    s128 = _round_up(max(S, 1), _LANE)
    t = max(_LANE, (min(max_tile, s128) // _LANE) * _LANE)
    while t > _LANE and t * bytes_per_lane > budget_bytes:
        t -= _LANE
    best_div = _LANE
    d = _LANE
    while d <= t:
        if s128 % d == 0:
            best_div = d
        d += _LANE
    if best_div * 2 >= t:
        return best_div
    return t


# ---------------------------------------------------------------------------
# Kernel 1: streamed pooling reduction + adaptive MLP + softmax -> lam (B, 2)
# ---------------------------------------------------------------------------
def _make_embed_kernel(B, C, tile_s, total_s, hoist, has_pad, group=4):
    n_chunks = tile_s // _LANE
    inv_s = 1.0 / float(total_s)
    neg_inf = float("-inf")

    def kernel(x_ref, w1a_ref, w1b_ref, b1_ref, w2_ref, b2_ref, w3_ref, b3_ref,
               lam_ref, sum_st, max_s, max_t):
        k = pl.program_id(0)

        @pl.when(k == 0)
        def _init():
            sum_st[...] = jnp.zeros_like(sum_st)
            max_s[...] = jnp.full_like(max_s, neg_inf)
            max_t[...] = jnp.full_like(max_t, neg_inf)

        if has_pad:
            lane_idx = jax.lax.broadcasted_iota(jnp.int32, (B, C, _LANE), 2)
            base = k * tile_s

        def load(i):
            lo = i * _LANE
            cs = x_ref[:B, :, lo:lo + _LANE]      # x_s chunk (B, C, 128)
            ct = x_ref[B:, :, lo:lo + _LANE]      # x_t chunk (B, C, 128)
            if has_pad:
                valid = (lane_idx + (base + lo)) < total_s
                return (cs, ct,
                        jnp.where(valid, cs, neg_inf),
                        jnp.where(valid, ct, neg_inf))
            return cs, ct, cs, ct

        if hoist:
            # Accumulators live in vregs for the whole grid step; scratch is
            # read once and written once (no per-chunk RMW traffic).
            acc_sum = sum_st[...]
            acc_ms = max_s[...]
            acc_mt = max_t[...]
            for i in range(n_chunks):
                cs, ct, cs_m, ct_m = load(i)
                acc_sum = acc_sum + (cs + ct)     # zero pad lanes don't perturb sums
                acc_ms = jnp.maximum(acc_ms, cs_m)
                acc_mt = jnp.maximum(acc_mt, ct_m)
            sum_st[...] = acc_sum
            max_s[...] = acc_ms
            max_t[...] = acc_mt
        else:
            # Too many accumulator vregs to keep live: combine `group` chunks
            # in vregs, then one scratch RMW per group (group-x fewer RMWs).
            for g0 in range(0, n_chunks, group):
                cs, ct, cs_m, ct_m = load(g0)
                g_sum = cs + ct
                g_ms = cs_m
                g_mt = ct_m
                for i in range(g0 + 1, min(g0 + group, n_chunks)):
                    cs, ct, cs_m, ct_m = load(i)
                    g_sum = g_sum + (cs + ct)
                    g_ms = jnp.maximum(g_ms, cs_m)
                    g_mt = jnp.maximum(g_mt, ct_m)
                sum_st[...] = sum_st[...] + g_sum
                max_s[...] = jnp.maximum(max_s[...], g_ms)
                max_t[...] = jnp.maximum(max_t[...], g_mt)

        @pl.when(k == pl.num_programs(0) - 1)
        def _epilogue():
            avg_st = jnp.sum(sum_st[...], axis=-1) * inv_s     # == avg_s + avg_t
            mx_s = jnp.max(max_s[...], axis=-1)
            mx_t = jnp.max(max_t[...], axis=-1)
            # Folded FC1 (bias applied twice to match FC1(embd_s)+FC1(embd_t)).
            e = (jnp.dot(avg_st, w1a_ref[...], preferred_element_type=jnp.float32)
                 + jnp.dot(mx_s + mx_t, w1b_ref[...],
                           preferred_element_type=jnp.float32)
                 + 2.0 * b1_ref[...])
            h = jnp.dot(e, w2_ref[...], preferred_element_type=jnp.float32) + b2_ref[...]
            h = jnp.maximum(h, 0.0)
            logits = (jnp.dot(h, w3_ref[...], preferred_element_type=jnp.float32)
                      + b3_ref[...])                           # (B, 2)
            m = jnp.max(logits, axis=1, keepdims=True)
            ex = jnp.exp(logits - m)
            lam_ref[...] = ex / jnp.sum(ex, axis=1, keepdims=True)

    return kernel


# ---------------------------------------------------------------------------
# Kernel 2: fused  out = cat(x_s, x_t, lam0*x_s + lam1*x_t)  over (B, S) tiles
# ---------------------------------------------------------------------------
def interp_concat_kernel(lam_ref, xs_ref, xt_ref, out_ref):
    b = pl.program_id(0)
    l0 = lam_ref[b, 0]
    l1 = lam_ref[b, 1]
    xs = xs_ref[...]                     # (1, C, TILE_S)
    xt = xt_ref[...]
    out_ref[0] = xs
    out_ref[1] = xt
    out_ref[2] = l0 * xs + l1 * xt


# ---------------------------------------------------------------------------
# Python wrapper
# ---------------------------------------------------------------------------
def idm_forward(x, params, training=True, max_tile_s=8192, hoist_override=None):
    """x: (bs, C, T, H, W) float32. Returns (out, lam) as in IDM.forward.

    Note: eval mode returns bare x (matches the PyTorch module's semantics).
    """
    if not training:
        return x

    bs, C, T, H, W = x.shape
    assert bs % 2 == 0
    B = bs // 2
    S = T * H * W
    C2 = C // 2

    x_flat = x.reshape(bs, C, S)          # free view; no x_s/x_t HBM copies
    w1, b1, w2, b2, w3, b3 = params
    w1a = w1[:C]                          # FC1 rows acting on the avg-pool half
    w1b = w1[C:]                          # FC1 rows acting on the max-pool half

    # Generation-aware scoped-VMEM limit: ~5/8 of physical VMEM, capped.
    # (128 MiB v5e/v6e -> 80 MiB, 64 MiB v7x -> 40 MiB.)
    vmem_cap = _vmem_capacity_bytes()
    vmem_limit = min(96 * 1024 * 1024, (vmem_cap * 5) // 8)
    tile_budget = vmem_limit // 2         # headroom for scratch/weights/internal

    # ---- Kernel 1: lam = softmax(MLP(pooled embeddings)) ----
    tile_e = _choose_tile_s(S, bytes_per_lane=16 * B * C,   # 2B*C*4B, double-buffered
                            budget_bytes=tile_budget, max_tile=max_tile_s)
    n_e = -(-_round_up(S, _LANE) // tile_e)
    s_pad_e = n_e * tile_e
    x_e = x_flat if s_pad_e == S else jnp.pad(
        x_flat, ((0, 0), (0, 0), (0, s_pad_e - S)))

    # Keep accumulators in vregs only while 3*B*ceil(C/8) + working set fits.
    acc_vregs = 3 * B * ((C + 7) // 8)
    hoist = (acc_vregs <= 48) if hoist_override is None else hoist_override

    lam = pl.pallas_call(
        _make_embed_kernel(B, C, tile_e, S, hoist, s_pad_e != S),
        out_shape=jax.ShapeDtypeStruct((B, 2), jnp.float32),
        grid=(n_e,),
        in_specs=[
            pl.BlockSpec((bs, C, tile_e), lambda k: (0, 0, k)),   # streamed x
            pl.BlockSpec((C, C), lambda k: (0, 0)),               # w1a (resident)
            pl.BlockSpec((C, C), lambda k: (0, 0)),               # w1b
            pl.BlockSpec((1, C), lambda k: (0, 0)),               # b1
            pl.BlockSpec((C, C2), lambda k: (0, 0)),              # w2
            pl.BlockSpec((1, C2), lambda k: (0, 0)),              # b2
            pl.BlockSpec((C2, 2), lambda k: (0, 0)),              # w3
            pl.BlockSpec((1, 2), lambda k: (0, 0)),               # b3
        ],
        out_specs=pl.BlockSpec((B, 2), lambda k: (0, 0)),
        scratch_shapes=[
            pltpu.VMEM((B, C, _LANE), jnp.float32),   # sum_st (= sum_s + sum_t)
            pltpu.VMEM((B, C, _LANE), jnp.float32),   # max_s
            pltpu.VMEM((B, C, _LANE), jnp.float32),   # max_t
        ],
        compiler_params=pltpu.CompilerParams(
            dimension_semantics=("arbitrary",),
            vmem_limit_bytes=vmem_limit),
    )(x_e, w1a, w1b, b1, w2, b2, w3, b3)

    # ---- Kernel 2: out = cat(x_s, x_t, lam0*x_s + lam1*x_t) in one pass ----
    tile_i = _choose_tile_s(S, bytes_per_lane=40 * C,       # (2 in + 3 out)*C*4B*2buf
                            budget_bytes=tile_budget, max_tile=max_tile_s)
    n_i = -(-_round_up(S, _LANE) // tile_i)
    s_pad_i = n_i * tile_i
    x_i = x_flat if s_pad_i == S else jnp.pad(
        x_flat, ((0, 0), (0, 0), (0, s_pad_i - S)))

    out3 = pl.pallas_call(
        interp_concat_kernel,
        out_shape=jax.ShapeDtypeStruct((3, B, C, s_pad_i), jnp.float32),
        grid=(B, n_i),
        in_specs=[
            pl.BlockSpec(memory_space=pltpu.MemorySpace.SMEM),    # lam scalars
            pl.BlockSpec((1, C, tile_i), lambda b, s: (b, 0, s)),     # x_s slab
            pl.BlockSpec((1, C, tile_i), lambda b, s: (b + B, 0, s)),  # x_t slab
        ],
        out_specs=pl.BlockSpec((3, 1, C, tile_i), lambda b, s: (0, b, 0, s)),
        compiler_params=pltpu.CompilerParams(
            dimension_semantics=("parallel", "parallel"),
            vmem_limit_bytes=vmem_limit),
    )(lam, x_i, x_i)

    if s_pad_i != S:
        out3 = out3[..., :S]              # rare fallback path only
    out = out3.reshape(3 * B, C, T, H, W)  # free view == cat along axis 0
    return out, lam


# ---------------------------------------------------------------------------
# Plain-JAX reference (for correctness check only)
# ---------------------------------------------------------------------------
def idm_reference(x, params):
    bs = x.shape[0]
    B = bs // 2
    w1, b1, w2, b2, w3, b3 = params
    x_s, x_t = x[:B], x[B:]

    def embd(v):
        avg = jnp.mean(v, axis=(2, 3, 4))
        mx = jnp.max(v, axis=(2, 3, 4))
        return jnp.concatenate([avg, mx], axis=1)

    e = (embd(x_s) @ w1 + b1) + (embd(x_t) @ w1 + b1)
    h = jnp.maximum(e @ w2 + b2, 0.0)
    lam = jax.nn.softmax(h @ w3 + b3, axis=1)
    x_inter = (lam[:, 0].reshape(-1, 1, 1, 1, 1) * x_s
               + lam[:, 1].reshape(-1, 1, 1, 1, 1) * x_t)
    return jnp.concatenate([x_s, x_t, x_inter], axis=0), lam


# ---------------------------------------------------------------------------
def make_params(key, channel):
    """Deterministic init mirroring normal_init(std=0.01), bias=0.
    Weights stored already transposed: (in_features, out_features)."""
    k1, k2, k3 = jax.random.split(key, 3)
    std = 0.01
    c2 = channel // 2
    w1 = std * jax.random.normal(k1, (2 * channel, channel), jnp.float32)
    b1 = jnp.zeros((1, channel), jnp.float32)
    w2 = std * jax.random.normal(k2, (channel, c2), jnp.float32)
    b2 = jnp.zeros((1, c2), jnp.float32)
    w3 = std * jax.random.normal(k3, (c2, 2), jnp.float32)
    b3 = jnp.zeros((1, 2), jnp.float32)
    return (w1, b1, w2, b2, w3, b3)


def _check(x, params, **kw):
    out, lam = idm_forward(x, params, **kw)
    out = jax.block_until_ready(out)
    lam = jax.block_until_ready(lam)
    ref_out, ref_lam = idm_reference(x, params)
    bs = x.shape[0]
    assert out.shape == (3 * (bs // 2),) + x.shape[1:]
    assert lam.shape == (bs // 2, 2)
    assert jnp.allclose(lam, ref_lam, atol=1e-5, rtol=1e-5)
    assert jnp.allclose(out, ref_out, atol=1e-5, rtol=1e-5)


if __name__ == "__main__":
    key = jax.random.PRNGKey(0)
    k_x, k_x2, k_p = jax.random.split(key, 3)

    bs, channel = 4, 32
    params = make_params(k_p, channel)

    # Test 1: S = 512 with max_tile_s=128 exercises the multi-step streamed
    # reduction (hoisted vreg accumulators) and the (B, S-tile) interp grid.
    x1 = jax.random.normal(k_x, (bs, channel, 4, 8, 16), jnp.float32)
    _check(x1, params, max_tile_s=128)

    # Test 2: S = 105 (not a multiple of 128) exercises the lane-padding /
    # -inf max-masking path, plus the grouped-RMW fallback (hoist_override).
    x2 = jax.random.normal(k_x2, (bs, channel, 3, 5, 7), jnp.float32)
    _check(x2, params, hoist_override=False)

    print("KERNEL_OK")
</pallas_src>

<mosaic_0001>
module attributes {stable_mosaic.version = 11 : i64} {
  func.func @kernel(%arg0: i32, %arg1: memref<4x32x128xf32, #tpu.memory_space<vmem>>, %arg2: memref<32x32xf32, #tpu.memory_space<vmem>>, %arg3: memref<32x32xf32, #tpu.memory_space<vmem>>, %arg4: memref<1x32xf32, #tpu.memory_space<vmem>>, %arg5: memref<32x16xf32, #tpu.memory_space<vmem>>, %arg6: memref<1x16xf32, #tpu.memory_space<vmem>>, %arg7: memref<16x2xf32, #tpu.memory_space<vmem>>, %arg8: memref<1x2xf32, #tpu.memory_space<vmem>>, %arg9: memref<2x2xf32, #tpu.memory_space<vmem>>, %arg10: memref<2x32x128xf32, #tpu.memory_space<vmem>>, %arg11: memref<2x32x128xf32, #tpu.memory_space<vmem>>, %arg12: memref<2x32x128xf32, #tpu.memory_space<vmem>>) attributes {dimension_semantics = [#tpu.dimension_semantics<arbitrary>], iteration_bounds = array<i64: 4>, scalar_prefetch = 0 : i64, scratch_operands = 3 : i64, tpu.core_type = #tpu.core_type<tc>, window_params = [{transform_indices = @transform_0, window_bounds = array<i64: 4, 32, 128>}, {pipeline_mode = #tpu.pipeline_mode<synchronous>, transform_indices = @transform_1, window_bounds = array<i64: 32, 32>}, {pipeline_mode = #tpu.pipeline_mode<synchronous>, transform_indices = @transform_2, window_bounds = array<i64: 32, 32>}, {pipeline_mode = #tpu.pipeline_mode<synchronous>, transform_indices = @transform_3, window_bounds = array<i64: 1, 32>}, {pipeline_mode = #tpu.pipeline_mode<synchronous>, transform_indices = @transform_4, window_bounds = array<i64: 32, 16>}, {pipeline_mode = #tpu.pipeline_mode<synchronous>, transform_indices = @transform_5, window_bounds = array<i64: 1, 16>}, {pipeline_mode = #tpu.pipeline_mode<synchronous>, transform_indices = @transform_6, window_bounds = array<i64: 16, 2>}, {pipeline_mode = #tpu.pipeline_mode<synchronous>, transform_indices = @transform_7, window_bounds = array<i64: 1, 2>}, {pipeline_mode = #tpu.pipeline_mode<synchronous>, transform_indices = @transform_8, window_bounds = array<i64: 2, 2>}]} {
    %c0_i32 = arith.constant 0 : i32
    %0 = arith.cmpi eq, %arg0, %c0_i32 : i32
    %1 = arith.extui %0 : i1 to i32
    %c0_i32_0 = arith.constant 0 : i32
    %2 = arith.cmpi ne, %1, %c0_i32_0 : i32
    scf.if %2 {
      %cst = arith.constant 0.000000e+00 : f32
      %18 = vector.broadcast %cst : f32 to vector<2x32x128xf32>
      %c0_24 = arith.constant 0 : index
      %c0_25 = arith.constant 0 : index
      %c0_26 = arith.constant 0 : index
      %19 = vector.load %arg10[%c0_24, %c0_25, %c0_26] : memref<2x32x128xf32, #tpu.memory_space<vmem>>, vector<2x32x128xf32>
      tpu.vector_store %arg10[%c0_24, %c0_25, %c0_26], %18 {strides = array<i32>} : memref<2x32x128xf32, #tpu.memory_space<vmem>>, vector<2x32x128xf32>,
      %cst_27 = arith.constant 0xFF800000 : f32
      %20 = vector.broadcast %cst_27 : f32 to vector<2x32x128xf32>
      %c0_28 = arith.constant 0 : index
      %c0_29 = arith.constant 0 : index
      %c0_30 = arith.constant 0 : index
      %21 = vector.load %arg11[%c0_28, %c0_29, %c0_30] : memref<2x32x128xf32, #tpu.memory_space<vmem>>, vector<2x32x128xf32>
      tpu.vector_store %arg11[%c0_28, %c0_29, %c0_30], %20 {strides = array<i32>} : memref<2x32x128xf32, #tpu.memory_space<vmem>>, vector<2x32x128xf32>,
      %cst_31 = arith.constant 0xFF800000 : f32
      %22 = vector.broadcast %cst_31 : f32 to vector<2x32x128xf32>
      %c0_32 = arith.constant 0 : index
      %c0_33 = arith.constant 0 : index
      %c0_34 = arith.constant 0 : index
      %23 = vector.load %arg12[%c0_32, %c0_33, %c0_34] : memref<2x32x128xf32, #tpu.memory_space<vmem>>, vector<2x32x128xf32>
      tpu.vector_store %arg12[%c0_32, %c0_33, %c0_34], %22 {strides = array<i32>} : memref<2x32x128xf32, #tpu.memory_space<vmem>>, vector<2x32x128xf32>,
    } else {
    }
    %c0 = arith.constant 0 : index
    %c0_1 = arith.constant 0 : index
    %c0_2 = arith.constant 0 : index
    %3 = vector.load %arg10[%c0, %c0_1, %c0_2] : memref<2x32x128xf32, #tpu.memory_space<vmem>>, vector<2x32x128xf32>
    %c0_3 = arith.constant 0 : index
    %c0_4 = arith.constant 0 : index
    %c0_5 = arith.constant 0 : index
    %4 = vector.load %arg11[%c0_3, %c0_4, %c0_5] : memref<2x32x128xf32, #tpu.memory_space<vmem>>, vector<2x32x128xf32>
    %c0_6 = arith.constant 0 : index
    %c0_7 = arith.constant 0 : index
    %c0_8 = arith.constant 0 : index
    %5 = vector.load %arg12[%c0_6, %c0_7, %c0_8] : memref<2x32x128xf32, #tpu.memory_space<vmem>>, vector<2x32x128xf32>
    %c0_9 = arith.constant 0 : index
    %c0_10 = arith.constant 0 : index
    %c0_11 = arith.constant 0 : index
    %6 = vector.load %arg1[%c0_9, %c0_10, %c0_11] : memref<4x32x128xf32, #tpu.memory_space<vmem>>, vector<2x32x128xf32>
    %c2 = arith.constant 2 : index
    %c0_12 = arith.constant 0 : index
    %c0_13 = arith.constant 0 : index
    %7 = vector.load %arg1[%c2, %c0_12, %c0_13] : memref<4x32x128xf32, #tpu.memory_space<vmem>>, vector<2x32x128xf32>
    %8 = arith.addf %6, %7 : vector<2x32x128xf32>
    %9 = arith.addf %3, %8 : vector<2x32x128xf32>
    %10 = arith.maximumf %4, %6 : vector<2x32x128xf32>
    %11 = arith.maximumf %5, %7 : vector<2x32x128xf32>
    %c0_14 = arith.constant 0 : index
    %c0_15 = arith.constant 0 : index
    %c0_16 = arith.constant 0 : index
    %12 = vector.load %arg10[%c0_14, %c0_15, %c0_16] : memref<2x32x128xf32, #tpu.memory_space<vmem>>, vector<2x32x128xf32>
    tpu.vector_store %arg10[%c0_14, %c0_15, %c0_16], %9 {strides = array<i32>} : memref<2x32x128xf32, #tpu.memory_space<vmem>>, vector<2x32x128xf32>,
    %c0_17 = arith.constant 0 : index
    %c0_18 = arith.constant 0 : index
    %c0_19 = arith.constant 0 : index
    %13 = vector.load %arg11[%c0_17, %c0_18, %c0_19] : memref<2x32x128xf32, #tpu.memory_space<vmem>>, vector<2x32x128xf32>
    tpu.vector_store %arg11[%c0_17, %c0_18, %c0_19], %10 {strides = array<i32>} : memref<2x32x128xf32, #tpu.memory_space<vmem>>, vector<2x32x128xf32>,
    %c0_20 = arith.constant 0 : index
    %c0_21 = arith.constant 0 : index
    %c0_22 = arith.constant 0 : index
    %14 = vector.load %arg12[%c0_20, %c0_21, %c0_22] : memref<2x32x128xf32, #tpu.memory_space<vmem>>, vector<2x32x128xf32>
    tpu.vector_store %arg12[%c0_20, %c0_21, %c0_22], %11 {strides = array<i32>} : memref<2x32x128xf32, #tpu.memory_space<vmem>>, vector<2x32x128xf32>,
    %c3_i32 = arith.constant 3 : i32
    %15 = arith.cmpi eq, %arg0, %c3_i32 : i32
    %16 = arith.extui %15 : i1 to i32
    %c0_i32_23 = arith.constant 0 : i32
    %17 = arith.cmpi ne, %16, %c0_i32_23 : i32
    scf.if %17 {
      %c0_24 = arith.constant 0 : index
      %c0_25 = arith.constant 0 : index
      %c0_26 = arith.constant 0 : index
      %18 = vector.load %arg10[%c0_24, %c0_25, %c0_26] : memref<2x32x128xf32, #tpu.memory_space<vmem>>, vector<2x32x128xf32>
      %cst = arith.constant dense<0.000000e+00> : vector<2x32xf32>
      %19 = vector.multi_reduction <add>, %18, %cst [2] : vector<2x32x128xf32> to vector<2x32xf32>
      %cst_27 = arith.constant 0.001953125 : f32
      %20 = vector.broadcast %cst_27 : f32 to vector<2x32xf32>
      %21 = arith.mulf %19, %20 : vector<2x32xf32>
      %c0_28 = arith.constant 0 : index
      %c0_29 = arith.constant 0 : index
      %c0_30 = arith.constant 0 : index
      %22 = vector.load %arg11[%c0_28, %c0_29, %c0_30] : memref<2x32x128xf32, #tpu.memory_space<vmem>>, vector<2x32x128xf32>
      %cst_31 = arith.constant dense<0xFF800000> : vector<2x32xf32>
      %23 = vector.multi_reduction <maximumf>, %22, %cst_31 [2] : vector<2x32x128xf32> to vector<2x32xf32>
      %c0_32 = arith.constant 0 : index
      %c0_33 = arith.constant 0 : index
      %c0_34 = arith.constant 0 : index
      %24 = vector.load %arg12[%c0_32, %c0_33, %c0_34] : memref<2x32x128xf32, #tpu.memory_space<vmem>>, vector<2x32x128xf32>
      %cst_35 = arith.constant dense<0xFF800000> : vector<2x32xf32>
      %25 = vector.multi_reduction <maximumf>, %24, %cst_35 [2] : vector<2x32x128xf32> to vector<2x32xf32>
      %c0_36 = arith.constant 0 : index
      %c0_37 = arith.constant 0 : index
      %26 = vector.load %arg2[%c0_36, %c0_37] : memref<32x32xf32, #tpu.memory_space<vmem>>, vector<32x32xf32>
      %cst_38 = arith.constant dense<0.000000e+00> : vector<2x32xf32>
      %27 = tpu.matmul %21, %26, %cst_38 {dimension_numbers = #tpu.dot_dimension_numbers<[1], [0], [0], [1], [0, 0, 1, 1], [], []>} : vector<2x32xf32>, vector<32x32xf32>, vector<2x32xf32> -> vector<2x32xf32>
      %28 = arith.addf %23, %25 : vector<2x32xf32>
      %c0_39 = arith.constant 0 : index
      %c0_40 = arith.constant 0 : index
      %29 = vector.load %arg3[%c0_39, %c0_40] : memref<32x32xf32, #tpu.memory_space<vmem>>, vector<32x32xf32>
      %cst_41 = arith.constant dense<0.000000e+00> : vector<2x32xf32>
      %30 = tpu.matmul %28, %29, %cst_41 {dimension_numbers = #tpu.dot_dimension_numbers<[1], [0], [0], [1], [0, 0, 1, 1], [], []>} : vector<2x32xf32>, vector<32x32xf32>, vector<2x32xf32> -> vector<2x32xf32>
      %31 = arith.addf %27, %30 : vector<2x32xf32>
      %c0_42 = arith.constant 0 : index
      %c0_43 = arith.constant 0 : index
      %32 = vector.load %arg4[%c0_42, %c0_43] : memref<1x32xf32, #tpu.memory_space<vmem>>, vector<1x32xf32>
      %cst_44 = arith.constant 2.000000e+00 : f32
      %33 = vector.broadcast %cst_44 : f32 to vector<1x32xf32>
      %34 = arith.mulf %33, %32 : vector<1x32xf32>
      %35 = vector.broadcast %34 : vector<1x32xf32> to vector<2x32xf32>
      %36 = arith.addf %31, %35 : vector<2x32xf32>
      %c0_45 = arith.constant 0 : index
      %c0_46 = arith.constant 0 : index
      %37 = vector.load %arg5[%c0_45, %c0_46] : memref<32x16xf32, #tpu.memory_space<vmem>>, vector<32x16xf32>
      %cst_47 = arith.constant dense<0.000000e+00> : vector<2x16xf32>
      %38 = tpu.matmul %36, %37, %cst_47 {dimension_numbers = #tpu.dot_dimension_numbers<[1], [0], [0], [1], [0, 0, 1, 1], [], []>} : vector<2x32xf32>, vector<32x16xf32>, vector<2x16xf32> -> vector<2x16xf32>
      %c0_48 = arith.constant 0 : index
      %c0_49 = arith.constant 0 : index
      %39 = vector.load %arg6[%c0_48, %c0_49] : memref<1x16xf32, #tpu.memory_space<vmem>>, vector<1x16xf32>
      %40 = vector.broadcast %39 : vector<1x16xf32> to vector<2x16xf32>
      %41 = arith.addf %38, %40 : vector<2x16xf32>
      %cst_50 = arith.constant 0.000000e+00 : f32
      %42 = vector.broadcast %cst_50 : f32 to vector<2x16xf32>
      %43 = arith.maximumf %41, %42 : vector<2x16xf32>
      %c0_51 = arith.constant 0 : index
      %c0_52 = arith.constant 0 : index
      %44 = vector.load %arg7[%c0_51, %c0_52] : memref<16x2xf32, #tpu.memory_space<vmem>>, vector<16x2xf32>
      %cst_53 = arith.constant dense<0.000000e+00> : vector<2x2xf32>
      %45 = tpu.matmul %43, %44, %cst_53 {dimension_numbers = #tpu.dot_dimension_numbers<[1], [0], [0], [1], [0, 0, 1, 1], [], []>} : vector<2x16xf32>, vector<16x2xf32>, vector<2x2xf32> -> vector<2x2xf32>
      %c0_54 = arith.constant 0 : index
      %c0_55 = arith.constant 0 : index
      %46 = vector.load %arg8[%c0_54, %c0_55] : memref<1x2xf32, #tpu.memory_space<vmem>>, vector<1x2xf32>
      %47 = vector.broadcast %46 : vector<1x2xf32> to vector<2x2xf32>
      %48 = arith.addf %45, %47 : vector<2x2xf32>
      %cst_56 = arith.constant dense<0xFF800000> : vector<2xf32>
      %49 = vector.multi_reduction <maximumf>, %48, %cst_56 [1] : vector<2x2xf32> to vector<2xf32>
      %50 = vector.shape_cast %49 : vector<2xf32> to vector<2x1xf32>
      %51 = vector.broadcast %50 : vector<2x1xf32> to vector<2x2xf32>
      %52 = arith.subf %48, %51 : vector<2x2xf32>
      %53 = math.exp %52 : vector<2x2xf32>
      %cst_57 = arith.constant dense<0.000000e+00> : vector<2xf32>
      %54 = vector.multi_reduction <add>, %53, %cst_57 [1] : vector<2x2xf32> to vector<2xf32>
      %55 = vector.shape_cast %54 : vector<2xf32> to vector<2x1xf32>
      %56 = vector.broadcast %55 : vector<2x1xf32> to vector<2x2xf32>
      %57 = arith.divf %53, %56 : vector<2x2xf32>
      %c0_58 = arith.constant 0 : index
      %c0_59 = arith.constant 0 : index
      %58 = vector.load %arg9[%c0_58, %c0_59] : memref<2x2xf32, #tpu.memory_space<vmem>>, vector<2x2xf32>
      tpu.vector_store %arg9[%c0_58, %c0_59], %57 {strides = array<i32>} : memref<2x2xf32, #tpu.memory_space<vmem>>, vector<2x2xf32>,
    } else {
    }
    return
  }
  func.func @transform_0(%arg0: i32) -> (i32, i32, i32) {
    %c0_i32 = arith.constant 0 : i32
    %c0_i32_0 = arith.constant 0 : i32
    %c0_i32_1 = arith.constant 0 : i32
    return %c0_i32, %c0_i32_0, %arg0 : i32, i32, i32
  }
  func.func @transform_1(%arg0: i32) -> (i32, i32) {
    %c0_i32 = arith.constant 0 : i32
    %c0_i32_0 = arith.constant 0 : i32
    %c0_i32_1 = arith.constant 0 : i32
    return %c0_i32, %c0_i32_0 : i32, i32
  }
  func.func @transform_2(%arg0: i32) -> (i32, i32) {
    %c0_i32 = arith.constant 0 : i32
    %c0_i32_0 = arith.constant 0 : i32
    %c0_i32_1 = arith.constant 0 : i32
    return %c0_i32, %c0_i32_0 : i32, i32
  }
  func.func @transform_3(%arg0: i32) -> (i32, i32) {
    %c0_i32 = arith.constant 0 : i32
    %c0_i32_0 = arith.constant 0 : i32
    %c0_i32_1 = arith.constant 0 : i32
    return %c0_i32, %c0_i32_0 : i32, i32
  }
  func.func @transform_4(%arg0: i32) -> (i32, i32) {
    %c0_i32 = arith.constant 0 : i32
    %c0_i32_0 = arith.constant 0 : i32
    %c0_i32_1 = arith.constant 0 : i32
    return %c0_i32, %c0_i32_0 : i32, i32
  }
  func.func @transform_5(%arg0: i32) -> (i32, i32) {
    %c0_i32 = arith.constant 0 : i32
    %c0_i32_0 = arith.constant 0 : i32
    %c0_i32_1 = arith.constant 0 : i32
    return %c0_i32, %c0_i32_0 : i32, i32
  }
  func.func @transform_6(%arg0: i32) -> (i32, i32) {
    %c0_i32 = arith.constant 0 : i32
    %c0_i32_0 = arith.constant 0 : i32
    %c0_i32_1 = arith.constant 0 : i32
    return %c0_i32, %c0_i32_0 : i32, i32
  }
  func.func @transform_7(%arg0: i32) -> (i32, i32) {
    %c0_i32 = arith.constant 0 : i32
    %c0_i32_0 = arith.constant 0 : i32
    %c0_i32_1 = arith.constant 0 : i32
    return %c0_i32, %c0_i32_0 : i32, i32
  }
  func.func @transform_8(%arg0: i32) -> (i32, i32) {
    %c0_i32 = arith.constant 0 : i32
    %c0_i32_0 = arith.constant 0 : i32
    %c0_i32_1 = arith.constant 0 : i32
    return %c0_i32, %c0_i32_0 : i32, i32
  }
}

</mosaic_0001>

<llo_original>
// kernel: tpu_custom_call.1
$region0: #{tpu_custom_call.1}
  #allocation0 [shape = 'u32[]', space=smem, size = 0x4, offset = 0x4, fixed_abs, tag = 'smem constant byte address 0x4 - core index']
  #allocation1 [shape = 'u32[144,128]{1,0:T(1,128)}', space=vmem, size = 0x12000, scoped, tag = 'internal scratch']
  #allocation2 [shape = 'f32[2,32,128]{2,1,0:T(8,128)}', space=vmem, size = 0x8000, scoped, tag = 'scratch operand']
  #allocation3 [shape = 'f32[2,32,128]{2,1,0:T(8,128)}', space=vmem, size = 0x8000, scoped, tag = 'scratch operand']
  #allocation4 [shape = 'f32[2,32,128]{2,1,0:T(8,128)}', space=vmem, size = 0x8000, scoped, tag = 'scratch operand']
  %s0 = inlined_call_operand.hbm [shape: f32[4,32,512], index: 0, kind: input, shape index: {}]
  %s1 = inlined_call_operand.vmem [shape: f32[32,32], index: 1, kind: input, shape index: {}]
  %s2 = inlined_call_operand.vmem [shape: f32[32,32], index: 2, kind: input, shape index: {}]
  %s3 = inlined_call_operand.vmem [shape: f32[1,32], index: 3, kind: input, shape index: {}]
  %s4 = inlined_call_operand.vmem [shape: f32[32,16], index: 4, kind: input, shape index: {}]
  %s5 = inlined_call_operand.vmem [shape: f32[1,16], index: 5, kind: input, shape index: {}]
  %s6 = inlined_call_operand.vmem [shape: f32[16,2], index: 6, kind: input, shape index: {}]
  %s7 = inlined_call_operand.vmem [shape: f32[1,2], index: 7, kind: input, shape index: {}]
  %s8 = inlined_call_operand.hbm [shape: f32[2,2], index: 8, kind: output, shape index: {}]
  %s9 = sld [smem:[#allocation0]]
  $region77: #{tpu_custom_call.1} parent=0
    _
  %s11 = ssub.s32 1, %s9
  %s12 = scalar_select 0, %s11, %s9
  $region1: #{tpu_custom_call.1} parent=0
    #allocation5 [shape = 'u8[131072]{0}', space=vmem, size = 0x20000, scoped, tag = 'input window, operand 0']
    #allocation6 [shape = 's32[2]{0}', space=sflag, size = 0x8, scoped, tag = 'scoped memory for tpu_custom_call.1']
    #allocation7 [shape = 's32[2]{0}', space=sflag, size = 0x8, scoped, tag = 'scoped memory for tpu_custom_call.1']
    #allocation8 [shape = 'u8[1024]{0}', space=vmem, size = 0x400, scoped, tag = 'output window, operand 0, single buffered']
    %13 = vsyncpa [#allocation6], 0
    %s14 = scalar_lea.sflag [#allocation6], 1
    %15 = vsyncpa %s14, 0
    %16 = vsyncpa [#allocation7], 0
    loop: start=0, step=1, limit=6
    $region2: #{tpu_custom_call.1} parent=1 // loop_pre_header
      _
    $region3: #{tpu_custom_call.1} parent=1 // loop_header
      %s18 = sphi 0, %s22
      %p19 = scmp.ge.s32.totalorder %s18, 6
      %s28 = sphi 0, %s30
      %s31 = sphi 0, %s28
      %s32 = sphi 0, %s31
      %s48 = sphi 0, %s32
      %s52 = sphi 0, %s52
      %s54 = sphi 0, %s52
      %s55 = sphi 0, %s54
      %s69 = sphi 0, %s55
      %s73 = sphi 0, %s73
      %s75 = sphi 0, %s73
      %s76 = sphi 0, %s75
      %s90 = sphi 0, %s76
      %s94 = sphi 0, %s94
      %s96 = sphi 0, %s94
      %s97 = sphi 0, %s96
      %s111 = sphi 0, %s97
      %s115 = sphi 0, %s115
      %s117 = sphi 0, %s115
      %s118 = sphi 0, %s117
      %s132 = sphi 0, %s118
      %s136 = sphi 0, %s136
      %s138 = sphi 0, %s136
      %s139 = sphi 0, %s138
      %s153 = sphi 0, %s139
      %s157 = sphi 0, %s157
      %s159 = sphi 0, %s157
      %s160 = sphi 0, %s159
      %s174 = sphi 0, %s160
      %s178 = sphi 0, %s178
      %s180 = sphi 0, %s178
      %s181 = sphi 0, %s180
      %s195 = sphi 0, %s181
      %s199 = sphi 0, %s199
      %s201 = sphi 0, %s199
      %s202 = sphi 0, %s201
      %s216 = sphi 0, %s202
    $region4: #{tpu_custom_call.1} parent=1 // loop_header_branch
      %21 = sbr.rel (%p19) target = $region8
    $region5: #{tpu_custom_call.1} parent=1 // loop_body
      %s23 = ssub.s32 %s18, 1
      %s24 = ssub.s32 %s18, 2
      %s25 = sadd.s32 %s18, 1
      %s26 = ssub.s32 %s18, %s25
      %p27 = scmp.eq.s32.totalorder %s26, 0
      %s29 = sadd.s32 %s28, 1
      %s30 = scalar_select %p27, %s28, %s29
      %p33 = pneg %p27
      %p34 = scmp.eq.s32.totalorder %s18, 3
      %p35 = por %p33, %p34
      %p36 = scmp.ne.s32.totalorder %s28, %s31
      %p37 = scmp.eq.s32.totalorder %s18, 0
      %p38 = por %p36, %p37
      %p39 = scmp.ne.s32.totalorder %s28, %s31
      %p40 = scmp.eq.s32.totalorder %s23, 3
      %p41 = por %p39, %p40
      %p42 = scmp.ne.s32.totalorder %s31, %s32
      %p43 = scmp.eq.s32.totalorder %s23, 0
      %p44 = por %p42, %p43
      %p45 = scmp.ne.s32.totalorder %s31, %s32
      %p46 = scmp.eq.s32.totalorder %s24, 3
      %p47 = por %p45, %p46
      %p49 = scmp.ne.s32.totalorder %s32, %s48
      %p50 = scmp.eq.s32.totalorder %s24, 0
      %p51 = por %p49, %p50
      %s53 = sadd.s32 %s52, 1
      %p56 = scmp.eq.s32.totalorder %s18, 3
      %p57 = scmp.ne.s32.totalorder %s52, %s54
      %p58 = scmp.eq.s32.totalorder %s18, 0
      %p59 = por %p57, %p58
      %p60 = scmp.ne.s32.totalorder %s52, %s54
      %p61 = scmp.eq.s32.totalorder %s23, 3
      %p62 = por %p60, %p61
      %p63 = scmp.ne.s32.totalorder %s54, %s55
      %p64 = scmp.eq.s32.totalorder %s23, 0
      %p65 = por %p63, %p64
      %p66 = scmp.ne.s32.totalorder %s54, %s55
      %p67 = scmp.eq.s32.totalorder %s24, 3
      %p68 = por %p66, %p67
      %p70 = scmp.ne.s32.totalorder %s55, %s69
      %p71 = scmp.eq.s32.totalorder %s24, 0
      %p72 = por %p70, %p71
      %s74 = sadd.s32 %s73, 1
      %p77 = scmp.eq.s32.totalorder %s18, 3
      %p78 = scmp.ne.s32.totalorder %s73, %s75
      %p79 = scmp.eq.s32.totalorder %s18, 0
      %p80 = por %p78, %p79
      %p81 = scmp.ne.s32.totalorder %s73, %s75
      %p82 = scmp.eq.s32.totalorder %s23, 3
      %p83 = por %p81, %p82
      %p84 = scmp.ne.s32.totalorder %s75, %s76
      %p85 = scmp.eq.s32.totalorder %s23, 0
      %p86 = por %p84, %p85
      %p87 = scmp.ne.s32.totalorder %s75, %s76
      %p88 = scmp.eq.s32.totalorder %s24, 3
      %p89 = por %p87, %p88
      %p91 = scmp.ne.s32.totalorder %s76, %s90
      %p92 = scmp.eq.s32.totalorder %s24, 0
      %p93 = por %p91, %p92
      %s95 = sadd.s32 %s94, 1
      %p98 = scmp.eq.s32.totalorder %s18, 3
      %p99 = scmp.ne.s32.totalorder %s94, %s96
      %p100 = scmp.eq.s32.totalorder %s18, 0
      %p101 = por %p99, %p100
      %p102 = scmp.ne.s32.totalorder %s94, %s96
      %p103 = scmp.eq.s32.totalorder %s23, 3
      %p104 = por %p102, %p103
      %p105 = scmp.ne.s32.totalorder %s96, %s97
      %p106 = scmp.eq.s32.totalorder %s23, 0
      %p107 = por %p105, %p106
      %p108 = scmp.ne.s32.totalorder %s96, %s97
      %p109 = scmp.eq.s32.totalorder %s24, 3
      %p110 = por %p108, %p109
      %p112 = scmp.ne.s32.totalorder %s97, %s111
      %p113 = scmp.eq.s32.totalorder %s24, 0
      %p114 = por %p112, %p113
      %s116 = sadd.s32 %s115, 1
      %p119 = scmp.eq.s32.totalorder %s18, 3
      %p120 = scmp.ne.s32.totalorder %s115, %s117
      %p121 = scmp.eq.s32.totalorder %s18, 0
      %p122 = por %p120, %p121
      %p123 = scmp.ne.s32.totalorder %s115, %s117
      %p124 = scmp.eq.s32.totalorder %s23, 3
      %p125 = por %p123, %p124
      %p126 = scmp.ne.s32.totalorder %s117, %s118
      %p127 = scmp.eq.s32.totalorder %s23, 0
      %p128 = por %p126, %p127
      %p129 = scmp.ne.s32.totalorder %s117, %s118
      %p130 = scmp.eq.s32.totalorder %s24, 3
      %p131 = por %p129, %p130
      %p133 = scmp.ne.s32.totalorder %s118, %s132
      %p134 = scmp.eq.s32.totalorder %s24, 0
      %p135 = por %p133, %p134
      %s137 = sadd.s32 %s136, 1
      %p140 = scmp.eq.s32.totalorder %s18, 3
      %p141 = scmp.ne.s32.totalorder %s136, %s138
      %p142 = scmp.eq.s32.totalorder %s18, 0
      %p143 = por %p141, %p142
      %p144 = scmp.ne.s32.totalorder %s136, %s138
      %p145 = scmp.eq.s32.totalorder %s23, 3
      %p146 = por %p144, %p145
      %p147 = scmp.ne.s32.totalorder %s138, %s139
      %p148 = scmp.eq.s32.totalorder %s23, 0
      %p149 = por %p147, %p148
      %p150 = scmp.ne.s32.totalorder %s138, %s139
      %p151 = scmp.eq.s32.totalorder %s24, 3
      %p152 = por %p150, %p151
      %p154 = scmp.ne.s32.totalorder %s139, %s153
      %p155 = scmp.eq.s32.totalorder %s24, 0
      %p156 = por %p154, %p155
      %s158 = sadd.s32 %s157, 1
      %p161 = scmp.eq.s32.totalorder %s18, 3
      %p162 = scmp.ne.s32.totalorder %s157, %s159
      %p163 = scmp.eq.s32.totalorder %s18, 0
      %p164 = por %p162, %p163
      %p165 = scmp.ne.s32.totalorder %s157, %s159
      %p166 = scmp.eq.s32.totalorder %s23, 3
      %p167 = por %p165, %p166
      %p168 = scmp.ne.s32.totalorder %s159, %s160
      %p169 = scmp.eq.s32.totalorder %s23, 0
      %p170 = por %p168, %p169
      %p171 = scmp.ne.s32.totalorder %s159, %s160
      %p172 = scmp.eq.s32.totalorder %s24, 3
      %p173 = por %p171, %p172
      %p175 = scmp.ne.s32.totalorder %s160, %s174
      %p176 = scmp.eq.s32.totalorder %s24, 0
      %p177 = por %p175, %p176
      %s179 = sadd.s32 %s178, 1
      %p182 = scmp.eq.s32.totalorder %s18, 3
      %p183 = scmp.ne.s32.totalorder %s178, %s180
      %p184 = scmp.eq.s32.totalorder %s18, 0
      %p185 = por %p183, %p184
      %p186 = scmp.ne.s32.totalorder %s178, %s180
      %p187 = scmp.eq.s32.totalorder %s23, 3
      %p188 = por %p186, %p187
      %p189 = scmp.ne.s32.totalorder %s180, %s181
      %p190 = scmp.eq.s32.totalorder %s23, 0
      %p191 = por %p189, %p190
      %p192 = scmp.ne.s32.totalorder %s180, %s181
      %p193 = scmp.eq.s32.totalorder %s24, 3
      %p194 = por %p192, %p193
      %p196 = scmp.ne.s32.totalorder %s181, %s195
      %p197 = scmp.eq.s32.totalorder %s24, 0
      %p198 = por %p196, %p197
      %s200 = sadd.s32 %s199, 1
      %p203 = scmp.eq.s32.totalorder %s18, 3
      %p204 = scmp.ne.s32.totalorder %s199, %s201
      %p205 = scmp.eq.s32.totalorder %s18, 0
      %p206 = por %p204, %p205
      %p207 = scmp.ne.s32.totalorder %s199, %s201
      %p208 = scmp.eq.s32.totalorder %s23, 3
      %p209 = por %p207, %p208
      %p210 = scmp.ne.s32.totalorder %s201, %s202
      %p211 = scmp.eq.s32.totalorder %s23, 0
      %p212 = por %p210, %p211
      %p213 = scmp.ne.s32.totalorder %s201, %s202
      %p214 = scmp.eq.s32.totalorder %s24, 3
      %p215 = por %p213, %p214
      %p217 = scmp.ne.s32.totalorder %s202, %s216
      %p218 = scmp.eq.s32.totalorder %s24, 0
      %p219 = por %p217, %p218
      %p220 = scmp.le.s32.totalorder 1, %s18
      %p221 = scmp.lt.s32.totalorder %s18, 5
      %p222 = pnand %p220, %p221
      %p223 = pneg %p222
      // Predicated region
      $region9: #{tpu_custom_call.1} parent=5 // pred_check
        _
      $region10: #{tpu_custom_call.1} parent=5 // pred_check_branch
        %225 = sbr.rel (%p222) target = $region12
      $region11: #{tpu_custom_call.1} parent=5 // pred_region
        %s226 = ssub.s32 %s18, 1
        // Predicated region
        $region13: #{tpu_custom_call.1} parent=11 // pred_check
          %p227 = pneg %p65
        $region14: #{tpu_custom_call.1} parent=11 // pred_check_branch
          %229 = sbr.rel (%p227) target = $region16
        $region15: #{tpu_custom_call.1} parent=11 // pred_region
          _
        $region16: #{tpu_custom_call.1} parent=11 // pred_fallthru
          _
        // Predicated region
        $region17: #{tpu_custom_call.1} parent=11 // pred_check
          %p230 = pneg %p86
        $region18: #{tpu_custom_call.1} parent=11 // pred_check_branch
          %232 = sbr.rel (%p230) target = $region20
        $region19: #{tpu_custom_call.1} parent=11 // pred_region
          _
        $region20: #{tpu_custom_call.1} parent=11 // pred_fallthru
          _
        // Predicated region
        $region21: #{tpu_custom_call.1} parent=11 // pred_check
          %p233 = pneg %p107
        $region22: #{tpu_custom_call.1} parent=11 // pred_check_branch
          %235 = sbr.rel (%p233) target = $region24
        $region23: #{tpu_custom_call.1} parent=11 // pred_region
          _
        $region24: #{tpu_custom_call.1} parent=11 // pred_fallthru
          _
        // Predicated region
        $region25: #{tpu_custom_call.1} parent=11 // pred_check
          %p236 = pneg %p128
        $region26: #{tpu_custom_call.1} parent=11 // pred_check_branch
          %238 = sbr.rel (%p236) target = $region28
        $region27: #{tpu_custom_call.1} parent=11 // pred_region
          _
        $region28: #{tpu_custom_call.1} parent=11 // pred_fallthru
          _
        // Predicated region
        $region29: #{tpu_custom_call.1} parent=11 // pred_check
          %p239 = pneg %p149
        $region30: #{tpu_custom_call.1} parent=11 // pred_check_branch
          %241 = sbr.rel (%p239) target = $region32
        $region31: #{tpu_custom_call.1} parent=11 // pred_region
          _
        $region32: #{tpu_custom_call.1} parent=11 // pred_fallthru
          _
        // Predicated region
        $region33: #{tpu_custom_call.1} parent=11 // pred_check
          %p242 = pneg %p170
        $region34: #{tpu_custom_call.1} parent=11 // pred_check_branch
          %244 = sbr.rel (%p242) target = $region36
        $region35: #{tpu_custom_call.1} parent=11 // pred_region
          _
        $region36: #{tpu_custom_call.1} parent=11 // pred_fallthru
          _
        // Predicated region
        $region37: #{tpu_custom_call.1} parent=11 // pred_check
          %p245 = pneg %p191
        $region38: #{tpu_custom_call.1} parent=11 // pred_check_branch
          %247 = sbr.rel (%p245) target = $region40
        $region39: #{tpu_custom_call.1} parent=11 // pred_region
          _
        $region40: #{tpu_custom_call.1} parent=11 // pred_fallthru
          _
      $region12: #{tpu_custom_call.1} parent=5 // pred_fallthru
        _
      %p248 = scmp.lt.s32.totalorder %s18, 4
      // Predicated region
      $region41: #{tpu_custom_call.1} parent=5 // pred_check
        %p249 = pneg %p248
      $region42: #{tpu_custom_call.1} parent=5 // pred_check_branch
        %251 = sbr.rel (%p249) target = $region44
      $region43: #{tpu_custom_call.1} parent=5 // pred_region
        // Predicated region
        $region45: #{tpu_custom_call.1} parent=43 // pred_check
          %p252 = pneg %p38
        $region46: #{tpu_custom_call.1} parent=43 // pred_check_branch
          %254 = sbr.rel (%p252) target = $region48
        $region47: #{tpu_custom_call.1} parent=43 // pred_region
          %s255 = sand.u32 %s28, 1
          %s256 = scalar_lea.sflag [#allocation6], %s255
          %s257 = sand.u32 %s28, 1
          %s258 = smul.addr %s257, 128
          %s259 = scalar_lea.vmem [#allocation5], %s258
          %s261 = ssub.s32 2048, 2048
          %262 = vsyncadd %s256, %s261
          %s263 = smul.addr %s18, 128
          %s264 = scalar_lea.hbm %s0, %s263
          %s265 = sshll.u32 %s259, 4
          %s266 = int_to_ptr.vmem [resolvable:$true] %s265
          %271 = dma.hbm_to_vmem [thread:$0]  %s264, 2048, %s266, %s256, 512, 128, 8
        $region48: #{tpu_custom_call.1} parent=43 // pred_fallthru
          _
      $region44: #{tpu_custom_call.1} parent=5 // pred_fallthru
        _
      %p272 = scmp.le.s32.totalorder 1, %s18
      %p273 = scmp.lt.s32.totalorder %s18, 5
      %p274 = pnand %p272, %p273
      %p275 = pneg %p274
      // Predicated region
      $region49: #{tpu_custom_call.1} parent=5 // pred_check
        _
      $region50: #{tpu_custom_call.1} parent=5 // pred_check_branch
        %277 = sbr.rel (%p274) target = $region52
      $region51: #{tpu_custom_call.1} parent=5 // pred_region
        %s278 = ssub.s32 %s18, 1
        %s279 = sand.u32 %s31, 1
        %s280 = scalar_lea.sflag [#allocation6], %s279
        %s281 = sand.u32 %s31, 1
        %s282 = smul.addr %s281, 128
        %s283 = scalar_lea.vmem [#allocation5], %s282
        // Predicated region
        $region53: #{tpu_custom_call.1} parent=51 // pred_check
          %p284 = pneg %p44
        $region54: #{tpu_custom_call.1} parent=51 // pred_check_branch
          %286 = sbr.rel (%p284) target = $region56
        $region55: #{tpu_custom_call.1} parent=51 // pred_region
          %287 = dma.done %s280, 2048
        $region56: #{tpu_custom_call.1} parent=51 // pred_fallthru
          _
        %s288 = sand.u32 %s31, 1
        %s289 = scalar_lea.sflag [#allocation6], %s288
        %s290 = sand.u32 %s31, 1
        %s291 = smul.addr %s290, 128
        %s292 = scalar_lea.vmem [#allocation5], %s291
        %p293 = pneg %p44
        %p294 = pneg %p41
        %p295 = pneg %p65
        %p296 = pneg %p62
        %p297 = pneg %p86
        %p298 = pneg %p83
        %p299 = pneg %p107
        %p300 = pneg %p104
        %p301 = pneg %p128
        %p302 = pneg %p125
        %p303 = pneg %p149
        %p304 = pneg %p146
        %p305 = pneg %p170
        %p306 = pneg %p167
        %p307 = pneg %p191
        %p308 = pneg %p188
        %p309 = pneg %p212
        %p310 = pneg %p209
        %p311 = scmp.eq.s32.totalorder %s23, 0
        // Predicated region
        $region57: #{tpu_custom_call.1} parent=51 // pred_check
          %p312 = pneg %p311
        $region58: #{tpu_custom_call.1} parent=51 // pred_check_branch
          %314 = sbr.rel (%p312) target = $region60
        $region59: #{tpu_custom_call.1} parent=51 // pred_region
          %315 = vst [vmem:[#allocation2] sm:$0xff] 0.0
          %316 = vst [vmem:[#allocation2 + $0x8] sm:$0xff] 0.0
          %317 = vst [vmem:[#allocation2 + $0x10] sm:$0xff] 0.0
          %318 = vst [vmem:[#allocation2 + $0x18] sm:$0xff] 0.0
          %319 = vst [vmem:[#allocation2 + $0x20] sm:$0xff] 0.0
          %320 = vst [vmem:[#allocation2 + $0x28] sm:$0xff] 0.0
          %321 = vst [vmem:[#allocation2 + $0x30] sm:$0xff] 0.0
          %322 = vst [vmem:[#allocation2 + $0x38] sm:$0xff] 0.0
          %323 = vst [vmem:[#allocation3] sm:$0xff] -inf
          %324 = vst [vmem:[#allocation3 + $0x8] sm:$0xff] -inf
          %325 = vst [vmem:[#allocation3 + $0x10] sm:$0xff] -inf
          %326 = vst [vmem:[#allocation3 + $0x18] sm:$0xff] -inf
          %327 = vst [vmem:[#allocation3 + $0x20] sm:$0xff] -inf
          %328 = vst [vmem:[#allocation3 + $0x28] sm:$0xff] -inf
          %329 = vst [vmem:[#allocation3 + $0x30] sm:$0xff] -inf
          %330 = vst [vmem:[#allocation3 + $0x38] sm:$0xff] -inf
          %331 = vst [vmem:[#allocation4] sm:$0xff] -inf
          %332 = vst [vmem:[#allocation4 + $0x8] sm:$0xff] -inf
          %333 = vst [vmem:[#allocation4 + $0x10] sm:$0xff] -inf
          %334 = vst [vmem:[#allocation4 + $0x18] sm:$0xff] -inf
          %335 = vst [vmem:[#allocation4 + $0x20] sm:$0xff] -inf
          %336 = vst [vmem:[#allocation4 + $0x28] sm:$0xff] -inf
          %337 = vst [vmem:[#allocation4 + $0x30] sm:$0xff] -inf
          %338 = vst [vmem:[#allocation4 + $0x38] sm:$0xff] -inf
        $region60: #{tpu_custom_call.1} parent=51 // pred_fallthru
          _
        %v339 = vld [vmem:[#allocation2] sm:$0xff]
        %v340 = vld [vmem:[#allocation2 + $0x8] sm:$0xff]
        %v341 = vld [vmem:[#allocation2 + $0x10] sm:$0xff]
        %v342 = vld [vmem:[#allocation2 + $0x18] sm:$0xff]
        %v343 = vld [vmem:[#allocation2 + $0x20] sm:$0xff]
        %v344 = vld [vmem:[#allocation2 + $0x28] sm:$0xff]
        %v345 = vld [vmem:[#allocation2 + $0x30] sm:$0xff]
        %v346 = vld [vmem:[#allocation2 + $0x38] sm:$0xff]
        %v347 = vld [vmem:[#allocation3] sm:$0xff]
        %v348 = vld [vmem:[#allocation3 + $0x8] sm:$0xff]
        %v349 = vld [vmem:[#allocation3 + $0x10] sm:$0xff]
        %v350 = vld [vmem:[#allocation3 + $0x18] sm:$0xff]
        %v351 = vld [vmem:[#allocation3 + $0x20] sm:$0xff]
        %v352 = vld [vmem:[#allocation3 + $0x28] sm:$0xff]
        %v353 = vld [vmem:[#allocation3 + $0x30] sm:$0xff]
        %v354 = vld [vmem:[#allocation3 + $0x38] sm:$0xff]
        %v355 = vld [vmem:[#allocation4] sm:$0xff]
        %v356 = vld [vmem:[#allocation4 + $0x8] sm:$0xff]
        %v357 = vld [vmem:[#allocation4 + $0x10] sm:$0xff]
        %v358 = vld [vmem:[#allocation4 + $0x18] sm:$0xff]
        %v359 = vld [vmem:[#allocation4 + $0x20] sm:$0xff]
        %v360 = vld [vmem:[#allocation4 + $0x28] sm:$0xff]
        %v361 = vld [vmem:[#allocation4 + $0x30] sm:$0xff]
        %v362 = vld [vmem:[#allocation4 + $0x38] sm:$0xff]
        %v363 = vld [vmem:[%s283] sm:$0xff]
        %v364 = vld [vmem:[%s283 + $0x8] sm:$0xff]
        %v365 = vld [vmem:[%s283 + $0x10] sm:$0xff]
        %v366 = vld [vmem:[%s283 + $0x18] sm:$0xff]
        %v367 = vld [vmem:[%s283 + $0x20] sm:$0xff]
        %v368 = vld [vmem:[%s283 + $0x28] sm:$0xff]
        %v369 = vld [vmem:[%s283 + $0x30] sm:$0xff]
        %v370 = vld [vmem:[%s283 + $0x38] sm:$0xff]
        %s371 = scalar_lea.vmem %s283, 64 [#allocation5]
        %v372 = vld [vmem:[%s371] sm:$0xff]
        %v373 = vld [vmem:[%s371 + $0x8] sm:$0xff]
        %v374 = vld [vmem:[%s371 + $0x10] sm:$0xff]
        %v375 = vld [vmem:[%s371 + $0x18] sm:$0xff]
        %v376 = vld [vmem:[%s371 + $0x20] sm:$0xff]
        %v377 = vld [vmem:[%s371 + $0x28] sm:$0xff]
        %v378 = vld [vmem:[%s371 + $0x30] sm:$0xff]
        %v379 = vld [vmem:[%s371 + $0x38] sm:$0xff]
        %v380 = vadd.f32 %v363, %v372
        %v381 = vadd.f32 %v364, %v373
        %v382 = vadd.f32 %v365, %v374
        %v383 = vadd.f32 %v366, %v375
        %v384 = vadd.f32 %v367, %v376
        %v385 = vadd.f32 %v368, %v377
        %v386 = vadd.f32 %v369, %v378
        %v387 = vadd.f32 %v370, %v379
        %v388 = vadd.f32 %v339, %v380
        %v389 = vadd.f32 %v340, %v381
        %v390 = vadd.f32 %v341, %v382
        %v391 = vadd.f32 %v342, %v383
        %v392 = vadd.f32 %v343, %v384
        %v393 = vadd.f32 %v344, %v385
        %v394 = vadd.f32 %v345, %v386
        %v395 = vadd.f32 %v346, %v387
        %v396 = vmax.f32 %v347, %v363
        %v397 = vmax.f32 %v348, %v364
        %v398 = vmax.f32 %v349, %v365
        %v399 = vmax.f32 %v350, %v366
        %v400 = vmax.f32 %v351, %v367
        %v401 = vmax.f32 %v352, %v368
        %v402 = vmax.f32 %v353, %v369
        %v403 = vmax.f32 %v354, %v370
        %v404 = vmax.f32 %v355, %v372
        %v405 = vmax.f32 %v356, %v373
        %v406 = vmax.f32 %v357, %v374
        %v407 = vmax.f32 %v358, %v375
        %v408 = vmax.f32 %v359, %v376
        %v409 = vmax.f32 %v360, %v377
        %v410 = vmax.f32 %v361, %v378
        %v411 = vmax.f32 %v362, %v379
        %412 = vst [vmem:[#allocation2] sm:$0xff] %v388
        %413 = vst [vmem:[#allocation2 + $0x8] sm:$0xff] %v389
        %414 = vst [vmem:[#allocation2 + $0x10] sm:$0xff] %v390
        %415 = vst [vmem:[#allocation2 + $0x18] sm:$0xff] %v391
        %416 = vst [vmem:[#allocation2 + $0x20] sm:$0xff] %v392
        %417 = vst [vmem:[#allocation2 + $0x28] sm:$0xff] %v393
        %418 = vst [vmem:[#allocation2 + $0x30] sm:$0xff] %v394
        %419 = vst [vmem:[#allocation2 + $0x38] sm:$0xff] %v395
        %420 = vst [vmem:[#allocation3] sm:$0xff] %v396
        %421 = vst [vmem:[#allocation3 + $0x8] sm:$0xff] %v397
        %422 = vst [vmem:[#allocation3 + $0x10] sm:$0xff] %v398
        %423 = vst [vmem:[#allocation3 + $0x18] sm:$0xff] %v399
        %424 = vst [vmem:[#allocation3 + $0x20] sm:$0xff] %v400
        %425 = vst [vmem:[#allocation3 + $0x28] sm:$0xff] %v401
        %426 = vst [vmem:[#allocation3 + $0x30] sm:$0xff] %v402
        %427 = vst [vmem:[#allocation3 + $0x38] sm:$0xff] %v403
        %428 = vst [vmem:[#allocation4] sm:$0xff] %v404
        %429 = vst [vmem:[#allocation4 + $0x8] sm:$0xff] %v405
        %430 = vst [vmem:[#allocation4 + $0x10] sm:$0xff] %v406
        %431 = vst [vmem:[#allocation4 + $0x18] sm:$0xff] %v407
        %432 = vst [vmem:[#allocation4 + $0x20] sm:$0xff] %v408
        %433 = vst [vmem:[#allocation4 + $0x28] sm:$0xff] %v409
        %434 = vst [vmem:[#allocation4 + $0x30] sm:$0xff] %v410
        %435 = vst [vmem:[#allocation4 + $0x38] sm:$0xff] %v411
        %p436 = scmp.eq.s32.totalorder %s23, 3
        // Predicated region
        $region61: #{tpu_custom_call.1} parent=51 // pred_check
          %p437 = pneg %p436
        $region62: #{tpu_custom_call.1} parent=51 // pred_check_branch
          %439 = sbr.rel (%p437) target = $region64
        $region63: #{tpu_custom_call.1} parent=51 // pred_region
          %v440 = vld [vmem:[#allocation2] sm:$0xff]
          %v441 = vld [vmem:[#allocation2 + $0x8] sm:$0xff]
          %v442 = vld [vmem:[#allocation2 + $0x10] sm:$0xff]
          %v443 = vld [vmem:[#allocation2 + $0x18] sm:$0xff]
          %v444 = vld [vmem:[#allocation2 + $0x20] sm:$0xff]
          %v445 = vld [vmem:[#allocation2 + $0x28] sm:$0xff]
          %v446 = vld [vmem:[#allocation2 + $0x30] sm:$0xff]
          %v447 = vld [vmem:[#allocation2 + $0x38] sm:$0xff]
          %448 = vadd.xlane.f32.xlu0 %v440
          %v449 = vpop.xlane.xlu0 %448
          %450 = vadd.xlane.f32.xlu0 %v441
          %v451 = vpop.xlane.xlu0 %450
          %452 = vadd.xlane.f32.xlu0 %v442
          %v453 = vpop.xlane.xlu0 %452
          %454 = vadd.xlane.f32.xlu0 %v443
          %v455 = vpop.xlane.xlu0 %454
          %456 = vadd.xlane.f32.xlu0 %v444
          %v457 = vpop.xlane.xlu0 %456
          %458 = vadd.xlane.f32.xlu0 %v445
          %v459 = vpop.xlane.xlu0 %458
          %460 = vadd.xlane.f32.xlu0 %v446
          %v461 = vpop.xlane.xlu0 %460
          %462 = vadd.xlane.f32.xlu0 %v447
          %v463 = vpop.xlane.xlu0 %462
          %v464 = vmul.f32 %v449, 0.001953125
          %v465 = vmul.f32 %v451, 0.001953125
          %v466 = vmul.f32 %v453, 0.001953125
          %v467 = vmul.f32 %v455, 0.001953125
          %v468 = vmul.f32 %v457, 0.001953125
          %v469 = vmul.f32 %v459, 0.001953125
          %v470 = vmul.f32 %v461, 0.001953125
          %v471 = vmul.f32 %v463, 0.001953125
          %v472 = vld [vmem:[#allocation3] sm:$0xff]
          %v473 = vld [vmem:[#allocation3 + $0x8] sm:$0xff]
          %v474 = vld [vmem:[#allocation3 + $0x10] sm:$0xff]
          %v475 = vld [vmem:[#allocation3 + $0x18] sm:$0xff]
          %v476 = vld [vmem:[#allocation3 + $0x20] sm:$0xff]
          %v477 = vld [vmem:[#allocation3 + $0x28] sm:$0xff]
          %v478 = vld [vmem:[#allocation3 + $0x30] sm:$0xff]
          %v479 = vld [vmem:[#allocation3 + $0x38] sm:$0xff]
          %480 = vmax.xlane.f32.xlu0 %v472
          %v481 = vpop.xlane.xlu0 %480
          %482 = vmax.xlane.f32.xlu0 %v473
          %v483 = vpop.xlane.xlu0 %482
          %484 = vmax.xlane.f32.xlu0 %v474
          %v485 = vpop.xlane.xlu0 %484
          %486 = vmax.xlane.f32.xlu0 %v475
          %v487 = vpop.xlane.xlu0 %486
          %488 = vmax.xlane.f32.xlu0 %v476
          %v489 = vpop.xlane.xlu0 %488
          %490 = vmax.xlane.f32.xlu0 %v477
          %v491 = vpop.xlane.xlu0 %490
          %492 = vmax.xlane.f32.xlu0 %v478
          %v493 = vpop.xlane.xlu0 %492
          %494 = vmax.xlane.f32.xlu0 %v479
          %v495 = vpop.xlane.xlu0 %494
          %v496 = vld [vmem:[#allocation4] sm:$0xff]
          %v497 = vld [vmem:[#allocation4 + $0x8] sm:$0xff]
          %v498 = vld [vmem:[#allocation4 + $0x10] sm:$0xff]
          %v499 = vld [vmem:[#allocation4 + $0x18] sm:$0xff]
          %v500 = vld [vmem:[#allocation4 + $0x20] sm:$0xff]
          %v501 = vld [vmem:[#allocation4 + $0x28] sm:$0xff]
          %v502 = vld [vmem:[#allocation4 + $0x30] sm:$0xff]
          %v503 = vld [vmem:[#allocation4 + $0x38] sm:$0xff]
          %504 = vmax.xlane.f32.xlu0 %v496
          %v505 = vpop.xlane.xlu0 %504
          %506 = vmax.xlane.f32.xlu0 %v497
          %v507 = vpop.xlane.xlu0 %506
          %508 = vmax.xlane.f32.xlu0 %v498
          %v509 = vpop.xlane.xlu0 %508
          %510 = vmax.xlane.f32.xlu0 %v499
          %v511 = vpop.xlane.xlu0 %510
          %512 = vmax.xlane.f32.xlu0 %v500
          %v513 = vpop.xlane.xlu0 %512
          %514 = vmax.xlane.f32.xlu0 %v501
          %v515 = vpop.xlane.xlu0 %514
          %516 = vmax.xlane.f32.xlu0 %v502
          %v517 = vpop.xlane.xlu0 %516
          %518 = vmax.xlane.f32.xlu0 %v503
          %v519 = vpop.xlane.xlu0 %518
          %v520 = vld [vmem:[%s1] sm:$0xff]
          %v521 = vld [vmem:[%s1 + $0x8] sm:$0xff]
          %v522 = vld [vmem:[%s1 + $0x10] sm:$0xff]
          %v523 = vld [vmem:[%s1 + $0x18] sm:$0xff]
          %v524 = vadd.f32 %v481, %v505
          %v525 = vadd.f32 %v483, %v507
          %v526 = vadd.f32 %v485, %v509
          %v527 = vadd.f32 %v487, %v511
          %v528 = vadd.f32 %v489, %v513
          %v529 = vadd.f32 %v491, %v515
          %v530 = vadd.f32 %v493, %v517
          %v531 = vadd.f32 %v495, %v519
          %v532 = vld [vmem:[%s2] sm:$0xff]
          %v533 = vld [vmem:[%s2 + $0x8] sm:$0xff]
          %v534 = vld [vmem:[%s2 + $0x10] sm:$0xff]
          %v535 = vld [vmem:[%s2 + $0x18] sm:$0xff]
          %v544 = vlaneseq
          %v545 = vand.u32 %v544, 127
          %v546 = vlaneseq
          %v547 = vshrl.u32 %v546, 7
          %v548 = vsub.s32 %v545, %v547
          %v549 = vrot.slane %v524, %v548
          %v550 = vadd.s32 %v545, 4294967288
          %v551 = vlaneseq
          %v552 = vshrl.u32 %v551, 7
          %v553 = vsub.s32 %v550, %v552
          %v554 = vrot.slane %v525, %v553
          %vm555 = vcmask 130112
          %v556 = vsel %vm555, %v554, %v549
          %v557 = vadd.s32 %v545, 4294967280
          %v558 = vlaneseq
          %v559 = vshrl.u32 %v558, 7
          %v560 = vsub.s32 %v557, %v559
          %v561 = vrot.slane %v526, %v560
          %vm562 = vcmask 195712
          %v563 = vsel %vm562, %v561, %v556
          %v564 = vadd.s32 %v545, 4294967272
          %v565 = vlaneseq
          %v566 = vshrl.u32 %v565, 7
          %v567 = vsub.s32 %v564, %v566
          %v568 = vrot.slane %v527, %v567
          %vm569 = vcmask 261312
          %v570 = vsel %vm569, %v568, %v563
          %v571 = vlaneseq
          %v572 = vshrl.u32 %v571, 7
          %v573 = vsub.s32 %v545, %v572
          %v574 = vrot.slane %v528, %v573
          %v575 = vlaneseq
          %v576 = vshrl.u32 %v575, 7
          %v577 = vsub.s32 %v550, %v576
          %v578 = vrot.slane %v529, %v577
          %v579 = vsel %vm555, %v578, %v574
          %v580 = vlaneseq
          %v581 = vshrl.u32 %v580, 7
          %v582 = vsub.s32 %v557, %v581
          %v583 = vrot.slane %v530, %v582
          %v584 = vsel %vm562, %v583, %v579
          %v585 = vlaneseq
          %v586 = vshrl.u32 %v585, 7
          %v587 = vsub.s32 %v564, %v586
          %v588 = vrot.slane %v531, %v587
          %v589 = vsel %vm569, %v588, %v584
          %vm590 = vcmask 1041409
          %v591 = vsel %vm590, %v589, %v570
          %vm592 = vcmask 261120
          %v593 = vsel %vm592, %v591, 0
          %595 = vmatprep.subr.mxu0 0.0
          %596 = vmatpush1.msra.mxu0 %v532
          %597 = vmatprep.subr.mxu0 0.0
          %598 = vmatpush1.msra.mxu0 %v533
          %599 = vmatprep.subr.mxu0 0.0
          %600 = vmatpush1.msra.mxu0 %v534
          %601 = vmatprep.subr.mxu0 0.0
          %602 = vmatpush1.msra.mxu0 %v535
          %603 = vmatprep.subr.mxu0 0.0
          %604 = vmatpush1.msra.mxu0 0.0
          %605 = vmatprep.subr.mxu0 0.0
          %606 = vmatpush1.msra.mxu0 0.0
          %607 = vmatprep.subr.mxu0 0.0
          %608 = vmatpush1.msra.mxu0 0.0
          %609 = vmatprep.subr.mxu0 0.0
          %610 = vmatpush1.msra.mxu0 0.0
          %611 = vmatprep.subr.mxu0 0.0
          %612 = vmatpush1.msra.mxu0 0.0
          %613 = vmatprep.subr.mxu0 0.0
          %614 = vmatpush1.msra.mxu0 0.0
          %615 = vmatprep.subr.mxu0 0.0
          %616 = vmatpush1.msra.mxu0 0.0
          %617 = vmatprep.subr.mxu0 0.0
          %618 = vmatpush1.msra.mxu0 0.0
          %619 = vmatprep.subr.mxu0 0.0
          %620 = vmatpush1.msra.mxu0 0.0
          %621 = vmatprep.subr.mxu0 0.0
          %622 = vmatpush1.msra.mxu0 0.0
          %623 = vmatprep.subr.mxu0 0.0
          %624 = vmatpush1.msra.mxu0 0.0
          %625 = vmatprep.subr.mxu0 0.0
          %626 = vmatpush1.msra.mxu0 0.0
          %627 = vmatprep.subr.mxu0 0.0
          %628 = vmatpush1.msra.mxu0 0.0
          %629 = vmatprep.subr.mxu0 0.0
          %630 = vmatpush1.msra.mxu0 0.0
          %631 = vmatprep.subr.mxu0 0.0
          %632 = vmatpush1.msra.mxu0 0.0
          %633 = vmatprep.subr.mxu0 0.0
          %634 = vmatpush1.msra.mxu0 0.0
          %635 = vmatprep.subr.mxu0 0.0
          %636 = vmatpush1.msra.mxu0 0.0
          %637 = vmatprep.subr.mxu0 0.0
          %638 = vmatpush1.msra.mxu0 0.0
          %639 = vmatprep.subr.mxu0 0.0
          %640 = vmatpush1.msra.mxu0 0.0
          %641 = vmatprep.subr.mxu0 0.0
          %642 = vmatpush1.msra.mxu0 0.0
          %643 = vmatprep.subr.mxu0 0.0
          %644 = vmatpush1.msra.mxu0 0.0
          %645 = vmatprep.subr.mxu0 0.0
          %646 = vmatpush1.msra.mxu0 0.0
          %647 = vmatprep.subr.mxu0 0.0
          %648 = vmatpush1.msra.mxu0 0.0
          %649 = vmatprep.subr.mxu0 0.0
          %650 = vmatpush1.msra.mxu0 0.0
          %651 = vmatprep.subr.mxu0 0.0
          %652 = vmatpush1.msra.mxu0 0.0
          %653 = vmatprep.subr.mxu0 0.0
          %654 = vmatpush1.msra.mxu0 0.0
          %655 = vmatprep.subr.mxu0 0.0
          %656 = vmatpush1.msra.mxu0 0.0
          %657 = vmatprep.subr.mxu0 0.0
          %658 = vmatpush1.msra.mxu0 0.0
          %659 = vmatprep.mubr.f32.mxu0 0.0
          %660 = vmatmul.mubr.f32.gmra.mrb[0].mxu0 %v593
          %v661 = vpop.f32.mrb[0].mxu0
          %v662 = vadd.f32 0.0, %v661
          %v663 = vpop.f32.mrb[0].mxu0
          %664 = vdwg.mxu0
          %v673 = vlaneseq
          %v674 = vshrl.u32 %v673, 7
          %v675 = vsub.s32 %v545, %v674
          %v676 = vrot.slane %v464, %v675
          %v677 = vlaneseq
          %v678 = vshrl.u32 %v677, 7
          %v679 = vsub.s32 %v550, %v678
          %v680 = vrot.slane %v465, %v679
          %v681 = vsel %vm555, %v680, %v676
          %v682 = vlaneseq
          %v683 = vshrl.u32 %v682, 7
          %v684 = vsub.s32 %v557, %v683
          %v685 = vrot.slane %v466, %v684
          %v686 = vsel %vm562, %v685, %v681
          %v687 = vlaneseq
          %v688 = vshrl.u32 %v687, 7
          %v689 = vsub.s32 %v564, %v688
          %v690 = vrot.slane %v467, %v689
          %v691 = vsel %vm569, %v690, %v686
          %v692 = vlaneseq
          %v693 = vshrl.u32 %v692, 7
          %v694 = vsub.s32 %v545, %v693
          %v695 = vrot.slane %v468, %v694
          %v696 = vlaneseq
          %v697 = vshrl.u32 %v696, 7
          %v698 = vsub.s32 %v550, %v697
          %v699 = vrot.slane %v469, %v698
          %v700 = vsel %vm555, %v699, %v695
          %v701 = vlaneseq
          %v702 = vshrl.u32 %v701, 7
          %v703 = vsub.s32 %v557, %v702
          %v704 = vrot.slane %v470, %v703
          %v705 = vsel %vm562, %v704, %v700
          %v706 = vlaneseq
          %v707 = vshrl.u32 %v706, 7
          %v708 = vsub.s32 %v564, %v707
          %v709 = vrot.slane %v471, %v708
          %v710 = vsel %vm569, %v709, %v705
          %v711 = vsel %vm590, %v710, %v691
          %v712 = vsel %vm592, %v711, 0
          %714 = vmatprep.subr.mxu0 0.0
          %715 = vmatpush1.msra.mxu0 %v520
          %716 = vmatprep.subr.mxu0 0.0
          %717 = vmatpush1.msra.mxu0 %v521
          %718 = vmatprep.subr.mxu0 0.0
          %719 = vmatpush1.msra.mxu0 %v522
          %720 = vmatprep.subr.mxu0 0.0
          %721 = vmatpush1.msra.mxu0 %v523
          %722 = vmatprep.subr.mxu0 0.0
          %723 = vmatpush1.msra.mxu0 0.0
          %724 = vmatprep.subr.mxu0 0.0
          %725 = vmatpush1.msra.mxu0 0.0
          %726 = vmatprep.subr.mxu0 0.0
          %727 = vmatpush1.msra.mxu0 0.0
          %728 = vmatprep.subr.mxu0 0.0
          %729 = vmatpush1.msra.mxu0 0.0
          %730 = vmatprep.subr.mxu0 0.0
          %731 = vmatpush1.msra.mxu0 0.0
          %732 = vmatprep.subr.mxu0 0.0
          %733 = vmatpush1.msra.mxu0 0.0
          %734 = vmatprep.subr.mxu0 0.0
          %735 = vmatpush1.msra.mxu0 0.0
          %736 = vmatprep.subr.mxu0 0.0
          %737 = vmatpush1.msra.mxu0 0.0
          %738 = vmatprep.subr.mxu0 0.0
          %739 = vmatpush1.msra.mxu0 0.0
          %740 = vmatprep.subr.mxu0 0.0
          %741 = vmatpush1.msra.mxu0 0.0
          %742 = vmatprep.subr.mxu0 0.0
          %743 = vmatpush1.msra.mxu0 0.0
          %744 = vmatprep.subr.mxu0 0.0
          %745 = vmatpush1.msra.mxu0 0.0
          %746 = vmatprep.subr.mxu0 0.0
          %747 = vmatpush1.msra.mxu0 0.0
          %748 = vmatprep.subr.mxu0 0.0
          %749 = vmatpush1.msra.mxu0 0.0
          %750 = vmatprep.subr.mxu0 0.0
          %751 = vmatpush1.msra.mxu0 0.0
          %752 = vmatprep.subr.mxu0 0.0
          %753 = vmatpush1.msra.mxu0 0.0
          %754 = vmatprep.subr.mxu0 0.0
          %755 = vmatpush1.msra.mxu0 0.0
          %756 = vmatprep.subr.mxu0 0.0
          %757 = vmatpush1.msra.mxu0 0.0
          %758 = vmatprep.subr.mxu0 0.0
          %759 = vmatpush1.msra.mxu0 0.0
          %760 = vmatprep.subr.mxu0 0.0
          %761 = vmatpush1.msra.mxu0 0.0
          %762 = vmatprep.subr.mxu0 0.0
          %763 = vmatpush1.msra.mxu0 0.0
          %764 = vmatprep.subr.mxu0 0.0
          %765 = vmatpush1.msra.mxu0 0.0
          %766 = vmatprep.subr.mxu0 0.0
          %767 = vmatpush1.msra.mxu0 0.0
          %768 = vmatprep.subr.mxu0 0.0
          %769 = vmatpush1.msra.mxu0 0.0
          %770 = vmatprep.subr.mxu0 0.0
          %771 = vmatpush1.msra.mxu0 0.0
          %772 = vmatprep.subr.mxu0 0.0
          %773 = vmatpush1.msra.mxu0 0.0
          %774 = vmatprep.subr.mxu0 0.0
          %775 = vmatpush1.msra.mxu0 0.0
          %776 = vmatprep.subr.mxu0 0.0
          %777 = vmatpush1.msra.mxu0 0.0
          %778 = vmatprep.mubr.f32.mxu0 0.0
          %779 = vmatmul.mubr.f32.gmra.mrb[0].mxu0 %v712
          %v780 = vpop.f32.mrb[0].mxu0
          %v781 = vadd.f32 %v662, %v780
          %v782 = vpop.f32.mrb[0].mxu0
          %783 = vdwg.mxu0
          %v784 = vld [vmem:[%s3] sm:$0x1]
          %v785 = vmul.f32 %v784, 2.0
          %v787 = vlaneseq
          %v788 = vshrl.u32 %v787, 7
          %v789 = vsub.s32 0, %v788
          %v790 = vrot.slane %v785, %v789
          %v792 = vadd.f32 %v781, %v790
          %v793 = vld [vmem:[%s4] sm:$0xff]
          %v794 = vld [vmem:[%s4 + $0x8] sm:$0xff]
          %v795 = vld [vmem:[%s4 + $0x10] sm:$0xff]
          %v796 = vld [vmem:[%s4 + $0x18] sm:$0xff]
          %v797 = vld [vmem:[%s5] sm:$0x1]
          %v799 = vlaneseq
          %v800 = vshrl.u32 %v799, 7
          %v801 = vsub.s32 0, %v800
          %v802 = vrot.slane %v797, %v801
          %v805 = vsel %vm592, %v792, 0
          %807 = vmatprep.subr.mxu0 0.0
          %808 = vmatpush1.msra.mxu0 %v793
          %809 = vmatprep.subr.mxu0 0.0
          %810 = vmatpush1.msra.mxu0 %v794
          %811 = vmatprep.subr.mxu0 0.0
          %812 = vmatpush1.msra.mxu0 %v795
          %813 = vmatprep.subr.mxu0 0.0
          %814 = vmatpush1.msra.mxu0 %v796
          %815 = vmatprep.subr.mxu0 0.0
          %816 = vmatpush1.msra.mxu0 0.0
          %817 = vmatprep.subr.mxu0 0.0
          %818 = vmatpush1.msra.mxu0 0.0
          %819 = vmatprep.subr.mxu0 0.0
          %820 = vmatpush1.msra.mxu0 0.0
          %821 = vmatprep.subr.mxu0 0.0
          %822 = vmatpush1.msra.mxu0 0.0
          %823 = vmatprep.subr.mxu0 0.0
          %824 = vmatpush1.msra.mxu0 0.0
          %825 = vmatprep.subr.mxu0 0.0
          %826 = vmatpush1.msra.mxu0 0.0
          %827 = vmatprep.subr.mxu0 0.0
          %828 = vmatpush1.msra.mxu0 0.0
          %829 = vmatprep.subr.mxu0 0.0
          %830 = vmatpush1.msra.mxu0 0.0
          %831 = vmatprep.subr.mxu0 0.0
          %832 = vmatpush1.msra.mxu0 0.0
          %833 = vmatprep.subr.mxu0 0.0
          %834 = vmatpush1.msra.mxu0 0.0
          %835 = vmatprep.subr.mxu0 0.0
          %836 = vmatpush1.msra.mxu0 0.0
          %837 = vmatprep.subr.mxu0 0.0
          %838 = vmatpush1.msra.mxu0 0.0
          %839 = vmatprep.subr.mxu0 0.0
          %840 = vmatpush1.msra.mxu0 0.0
          %841 = vmatprep.subr.mxu0 0.0
          %842 = vmatpush1.msra.mxu0 0.0
          %843 = vmatprep.subr.mxu0 0.0
          %844 = vmatpush1.msra.mxu0 0.0
          %845 = vmatprep.subr.mxu0 0.0
          %846 = vmatpush1.msra.mxu0 0.0
          %847 = vmatprep.subr.mxu0 0.0
          %848 = vmatpush1.msra.mxu0 0.0
          %849 = vmatprep.subr.mxu0 0.0
          %850 = vmatpush1.msra.mxu0 0.0
          %851 = vmatprep.subr.mxu0 0.0
          %852 = vmatpush1.msra.mxu0 0.0
          %853 = vmatprep.subr.mxu0 0.0
          %854 = vmatpush1.msra.mxu0 0.0
          %855 = vmatprep.subr.mxu0 0.0
          %856 = vmatpush1.msra.mxu0 0.0
          %857 = vmatprep.subr.mxu0 0.0
          %858 = vmatpush1.msra.mxu0 0.0
          %859 = vmatprep.subr.mxu0 0.0
          %860 = vmatpush1.msra.mxu0 0.0
          %861 = vmatprep.subr.mxu0 0.0
          %862 = vmatpush1.msra.mxu0 0.0
          %863 = vmatprep.subr.mxu0 0.0
          %864 = vmatpush1.msra.mxu0 0.0
          %865 = vmatprep.subr.mxu0 0.0
          %866 = vmatpush1.msra.mxu0 0.0
          %867 = vmatprep.subr.mxu0 0.0
          %868 = vmatpush1.msra.mxu0 0.0
          %869 = vmatprep.subr.mxu0 0.0
          %870 = vmatpush1.msra.mxu0 0.0
          %871 = vmatprep.mubr.f32.mxu0 0.0
          %872 = vmatmul.mubr.f32.gmra.mrb[0].mxu0 %v805
          %v873 = vpop.f32.mrb[0].mxu0
          %v874 = vadd.f32 %v802, %v873
          %v875 = vpop.f32.mrb[0].mxu0
          %876 = vdwg.mxu0
          %v877 = vmax.f32 %v874, 0.0
          %v878 = vld [vmem:[%s6] sm:$0xff]
          %v879 = vld [vmem:[%s6 + $0x8] sm:$0xff]
          %v880 = vld [vmem:[%s7] sm:$0x1]
          %v882 = vlaneseq
          %v883 = vshrl.u32 %v882, 7
          %v884 = vsub.s32 0, %v883
          %v885 = vrot.slane %v880, %v884
          %vm887 = vcmask 130048
          %v889 = vsel %vm887, %v877, 0
          %891 = vmatprep.subr.mxu0 0.0
          %892 = vmatpush1.msra.mxu0 %v878
          %893 = vmatprep.subr.mxu0 0.0
          %894 = vmatpush1.msra.mxu0 %v879
          %895 = vmatprep.subr.mxu0 0.0
          %896 = vmatpush1.msra.mxu0 0.0
          %897 = vmatprep.subr.mxu0 0.0
          %898 = vmatpush1.msra.mxu0 0.0
          %899 = vmatprep.subr.mxu0 0.0
          %900 = vmatpush1.msra.mxu0 0.0
          %901 = vmatprep.subr.mxu0 0.0
          %902 = vmatpush1.msra.mxu0 0.0
          %903 = vmatprep.subr.mxu0 0.0
          %904 = vmatpush1.msra.mxu0 0.0
          %905 = vmatprep.subr.mxu0 0.0
          %906 = vmatpush1.msra.mxu0 0.0
          %907 = vmatprep.subr.mxu0 0.0
          %908 = vmatpush1.msra.mxu0 0.0
          %909 = vmatprep.subr.mxu0 0.0
          %910 = vmatpush1.msra.mxu0 0.0
          %911 = vmatprep.subr.mxu0 0.0
          %912 = vmatpush1.msra.mxu0 0.0
          %913 = vmatprep.subr.mxu0 0.0
          %914 = vmatpush1.msra.mxu0 0.0
          %915 = vmatprep.subr.mxu0 0.0
          %916 = vmatpush1.msra.mxu0 0.0
          %917 = vmatprep.subr.mxu0 0.0
          %918 = vmatpush1.msra.mxu0 0.0
          %919 = vmatprep.subr.mxu0 0.0
          %920 = vmatpush1.msra.mxu0 0.0
          %921 = vmatprep.subr.mxu0 0.0
          %922 = vmatpush1.msra.mxu0 0.0
          %923 = vmatprep.subr.mxu0 0.0
          %924 = vmatpush1.msra.mxu0 0.0
          %925 = vmatprep.subr.mxu0 0.0
          %926 = vmatpush1.msra.mxu0 0.0
          %927 = vmatprep.subr.mxu0 0.0
          %928 = vmatpush1.msra.mxu0 0.0
          %929 = vmatprep.subr.mxu0 0.0
          %930 = vmatpush1.msra.mxu0 0.0
          %931 = vmatprep.subr.mxu0 0.0
          %932 = vmatpush1.msra.mxu0 0.0
          %933 = vmatprep.subr.mxu0 0.0
          %934 = vmatpush1.msra.mxu0 0.0
          %935 = vmatprep.subr.mxu0 0.0
          %936 = vmatpush1.msra.mxu0 0.0
          %937 = vmatprep.subr.mxu0 0.0
          %938 = vmatpush1.msra.mxu0 0.0
          %939 = vmatprep.subr.mxu0 0.0
          %940 = vmatpush1.msra.mxu0 0.0
          %941 = vmatprep.subr.mxu0 0.0
          %942 = vmatpush1.msra.mxu0 0.0
          %943 = vmatprep.subr.mxu0 0.0
          %944 = vmatpush1.msra.mxu0 0.0
          %945 = vmatprep.subr.mxu0 0.0
          %946 = vmatpush1.msra.mxu0 0.0
          %947 = vmatprep.subr.mxu0 0.0
          %948 = vmatpush1.msra.mxu0 0.0
          %949 = vmatprep.subr.mxu0 0.0
          %950 = vmatpush1.msra.mxu0 0.0
          %951 = vmatprep.subr.mxu0 0.0
          %952 = vmatpush1.msra.mxu0 0.0
          %953 = vmatprep.subr.mxu0 0.0
          %954 = vmatpush1.msra.mxu0 0.0
          %955 = vmatprep.mubr.f32.mxu0 0.0
          %956 = vmatmul.mubr.f32.gmra.mrb[0].mxu0 %v889
          %v957 = vpop.f32.mrb[0].mxu0
          %v958 = vadd.f32 %v885, %v957
          %v959 = vpop.f32.mrb[0].mxu0
          %960 = vdwg.mxu0
          %vm961 = vcmask 9216
          %v962 = vsel %vm961, %v958, -inf
          %963 = vmax.xlane.f32.xlu0 %v962
          %v964 = vpop.xlane.xlu0 %963
          %v965 = vsub.f32 %v958, %v964
          %v966 = vmul.f32 %v965, 1.442695
          %v967 = vpow.pop %v966
          %v968 = vsel %vm961, %v967, 0.0
          %969 = vadd.xlane.f32.xlu0 %v968
          %v970 = vpop.xlane.xlu0 %969
          %v971 = vrcp.pop %v970
          %v972 = vmul.f32 %v967, %v971
          %973 = vst.msk [vmem:[#allocation8] sm:$0x3] %vm961, %v972
        $region64: #{tpu_custom_call.1} parent=51 // pred_fallthru
          _
        // Predicated region
        $region65: #{tpu_custom_call.1} parent=51 // pred_check
          %p974 = pneg %p209
        $region66: #{tpu_custom_call.1} parent=51 // pred_check_branch
          %976 = sbr.rel (%p974) target = $region68
        $region67: #{tpu_custom_call.1} parent=51 // pred_region
          %s978 = ssub.s32 32, 32
          %979 = vsyncadd [#allocation7], %s978
          %s981 = sshll.u32 [#allocation8], 4
          %s982 = int_to_ptr.vmem [resolvable:$true] %s981
          %984 = dma.vmem_to_hbm [thread:$0]  %s982, 32, %s8, [#allocation7]
        $region68: #{tpu_custom_call.1} parent=51 // pred_fallthru
          _
        // Predicated region
        $region69: #{tpu_custom_call.1} parent=51 // pred_check
          %p985 = pneg %p209
        $region70: #{tpu_custom_call.1} parent=51 // pred_check_branch
          %987 = sbr.rel (%p985) target = $region72
        $region71: #{tpu_custom_call.1} parent=51 // pred_region
          %988 = dma.done [#allocation7], 32
        $region72: #{tpu_custom_call.1} parent=51 // pred_fallthru
          _
      $region52: #{tpu_custom_call.1} parent=5 // pred_fallthru
        _
      %p989 = scmp.le.s32.totalorder 2, %s18
      // Predicated region
      $region73: #{tpu_custom_call.1} parent=5 // pred_check
        %p990 = pneg %p989
      $region74: #{tpu_custom_call.1} parent=5 // pred_check_branch
        %992 = sbr.rel (%p990) target = $region76
      $region75: #{tpu_custom_call.1} parent=5 // pred_region
        %s993 = ssub.s32 %s18, 2
      $region76: #{tpu_custom_call.1} parent=5 // pred_fallthru
        _
    $region6: #{tpu_custom_call.1} parent=1 // loop_footer
      %s22 = sadd.s32 1, %s18
    $region7: #{tpu_custom_call.1} parent=1 // loop_footer_branch
      %17 = sbr.rel target = $region3
    $region8: #{tpu_custom_call.1} parent=1 // loop_exit
      _
    %994 = vsyncpa [#allocation6], 1
    %s995 = scalar_lea.sflag [#allocation6], 1
    %996 = vsyncpa %s995, 1
    %997 = vsyncpa [#allocation7], 1
    %s998 = scalar_lea.sflag [#allocation7], 1
    %999 = vsyncpa %s998, 1

</llo_original>
